<compile_context>
chip_gen: v7x
topology: tpu7x:2x2x1
jax: 0.10.0
libtpu: 0.0.40
codegen_flags: <defaults>
</compile_context>

<pallas_src>
import math

import jax
import jax.numpy as jnp
from jax.experimental import pallas as pl
from jax.experimental.pallas import tpu as pltpu


def _mix_kernel(x_ref, h0_ref, ml_ref, mr_ref, xp_ref, h0p_ref):
    # x' = x @ ((1-alpha) * M),  h0' = h0 @ (alpha * M); scalars pre-folded into
    # ml/mr so the kernel carries no scalar operands at all.
    xp_ref[...] = jnp.dot(
        x_ref[...], ml_ref[...], preferred_element_type=jnp.float32
    ).astype(xp_ref.dtype)
    h0p_ref[...] = jnp.dot(
        h0_ref[...], mr_ref[...], preferred_element_type=jnp.float32
    ).astype(h0p_ref.dtype)


def _aggregate_kernel(adj_ref, xp_ref, h0p_ref, out_ref):
    # out_tile = adj_tile @ x' + h0'_tile   (f32 accumulation on the MXU)
    out_ref[...] = (
        jnp.dot(adj_ref[...], xp_ref[...], preferred_element_type=jnp.float32)
        + h0p_ref[...]
    ).astype(out_ref.dtype)


def _divisor_tile(n, requested):
    """Largest multiple-of-8 divisor of n that is <= requested (or n itself)."""
    t = int(min(requested, n))
    if n % 8 != 0 or t < 8:
        return n
    t = (t // 8) * 8
    while n % t != 0:
        t -= 8
    return t


def gcnii_forward(x, adj, h0, weight, alpha, beta, *,
                  row_tile=256, compute_dtype=jnp.bfloat16):
    """Pallas TPU forward of GCNIILayer.

    x, h0: (N, C) f32; adj: (N, N) dense row-normalized adjacency (the
    torch.sparse.mm is realized as a dense MXU matmul); weight: (C, C) f32;
    alpha, beta: python scalars.

    compute_dtype is the dtype of the dominant HBM stream (adj) and of the
    resident x' matmul operand; accumulation is always f32.  In a real GCNII
    stack adj would be cast to bf16 once and reused by every layer.
    """
    n, c = x.shape
    assert adj.shape == (n, n) and h0.shape == (n, c) and weight.shape == (c, c)
    f32 = jnp.float32

    # Tiny (C, C) mixing matrices with the alpha/beta scalars folded in (plain XLA).
    m = (1.0 - beta) * jnp.eye(c, dtype=f32) + beta * weight.astype(f32)
    m_left = ((1.0 - alpha) * m).astype(f32)
    m_right = (alpha * m).astype(f32)

    adj_c = adj.astype(compute_dtype)
    adj_itemsize = jax.dtypes.canonicalize_dtype(compute_dtype).itemsize

    # --- Pass 1: x' / h0' (one cheap sweep over the (N, C) feature matrices). ---
    mix_tile = _divisor_tile(n, 512)
    xp, h0p = pl.pallas_call(
        _mix_kernel,
        out_shape=(jax.ShapeDtypeStruct((n, c), compute_dtype),   # x'
                   jax.ShapeDtypeStruct((n, c), f32)),            # h0'
        grid=(n // mix_tile,),
        in_specs=[
            pl.BlockSpec((mix_tile, c), lambda i: (i, 0)),        # x row strip
            pl.BlockSpec((mix_tile, c), lambda i: (i, 0)),        # h0 row strip
            pl.BlockSpec((c, c), lambda i: (0, 0)),               # (1-a)*M (resident)
            pl.BlockSpec((c, c), lambda i: (0, 0)),               # a*M (resident)
        ],
        out_specs=(pl.BlockSpec((mix_tile, c), lambda i: (i, 0)),
                   pl.BlockSpec((mix_tile, c), lambda i: (i, 0))),
        compiler_params=pltpu.CompilerParams(
            dimension_semantics=("parallel",)),
    )(x.astype(f32), h0.astype(f32), m_left, m_right)

    # --- Pass 2: stream the dense adjacency. Size the row tile so the
    # double-buffered adj strip + the resident x' stay inside a conservative
    # VMEM budget (safe for v7x's smaller VMEM without raising scoped limits).
    vmem_budget = 24 * 1024 * 1024
    resident = n * c * adj_itemsize                       # x' kept resident in VMEM
    rows_cap = max(8, (vmem_budget - resident) // (2 * n * adj_itemsize))
    agg_tile = _divisor_tile(n, min(row_tile, rows_cap))
    # TODO(synk): for very large N (x' no longer fits resident), add a second
    # grid axis over adj columns with an f32 accumulator scratch (K-split).
    # NOTE: C < 128 leaves output stores lane-sparse; secondary since the adj
    # stream dominates HBM traffic.

    out = pl.pallas_call(
        _aggregate_kernel,
        out_shape=jax.ShapeDtypeStruct((n, c), f32),
        grid=(n // agg_tile,),
        in_specs=[
            pl.BlockSpec((agg_tile, n), lambda i: (i, 0)),        # adj strip (streamed)
            pl.BlockSpec((n, c), lambda i: (0, 0)),               # x' (resident, DMA'd once)
            pl.BlockSpec((agg_tile, c), lambda i: (i, 0)),        # h0' strip
        ],
        out_specs=pl.BlockSpec((agg_tile, c), lambda i: (i, 0)),
        compiler_params=pltpu.CompilerParams(
            dimension_semantics=("parallel",)),                   # megacore on v7x
    )(adj_c, xp, h0p)
    return out


def _reference(x, adj, h0, weight, alpha, beta):
    c = weight.shape[1]
    left = (1.0 - alpha) * (adj @ x) + alpha * h0
    right = (1.0 - beta) * jnp.eye(c, dtype=jnp.float32) + beta * weight
    return left @ right


if __name__ == "__main__":
    # in_channel == out_channel (required by the module's shapes), N nodes.
    N, C = 256, 32
    alpha, beta = 0.1, 0.5

    key = jax.random.PRNGKey(0)
    kx, kadj, kh0, kw = jax.random.split(key, 4)

    x = jax.random.normal(kx, (N, C), dtype=jnp.float32)
    h0 = jax.random.normal(kh0, (N, C), dtype=jnp.float32)

    # Dense, symmetric-ish, row-normalized adjacency standing in for the sparse adj.
    a = jax.random.uniform(kadj, (N, N), dtype=jnp.float32)
    adj = (a + a.T) * 0.5
    adj = adj / jnp.sum(adj, axis=1, keepdims=True)

    # reset_parameter(): U(-stdv, stdv) with stdv = 1/sqrt(out_channel).
    stdv = 1.0 / math.sqrt(C)
    w = jax.random.uniform(kw, (C, C), minval=-stdv, maxval=stdv, dtype=jnp.float32)

    ref = _reference(x, adj, h0, w, alpha, beta)

    # Full-precision streams: tight check against the f32 reference.
    out_f32 = gcnii_forward(x, adj, h0, w, alpha, beta,
                            row_tile=128, compute_dtype=jnp.float32)
    out_f32 = jax.block_until_ready(out_f32)
    assert out_f32.shape == (N, C)
    assert jnp.allclose(out_f32, ref, rtol=1e-3, atol=1e-3), "f32 kernel mismatch"

    # bf16 adjacency / x' streams (halves the dominant HBM traffic), f32 MXU
    # accumulation: validated against the f32 reference with a bf16-appropriate
    # tolerance, per review guidance.
    out_bf16 = gcnii_forward(x, adj, h0, w, alpha, beta,
                             row_tile=128, compute_dtype=jnp.bfloat16)
    out_bf16 = jax.block_until_ready(out_bf16)
    assert jnp.allclose(out_bf16, ref, rtol=1e-2, atol=1e-2), "bf16 kernel mismatch"

    print("KERNEL_OK")
</pallas_src>

<mosaic_0001>
module attributes {stable_mosaic.version = 11 : i64} {
  func.func @_mix_kernel(%arg0: i32, %arg1: memref<256x32xf32, #tpu.memory_space<vmem>>, %arg2: memref<256x32xf32, #tpu.memory_space<vmem>>, %arg3: memref<32x32xf32, #tpu.memory_space<vmem>>, %arg4: memref<32x32xf32, #tpu.memory_space<vmem>>, %arg5: memref<256x32xf32, #tpu.memory_space<vmem>>, %arg6: memref<256x32xf32, #tpu.memory_space<vmem>>) attributes {dimension_semantics = [#tpu.dimension_semantics<parallel>], iteration_bounds = array<i64: 1>, scalar_prefetch = 0 : i64, scratch_operands = 0 : i64, tpu.core_type = #tpu.core_type<tc>, window_params = [{transform_indices = @transform_0, window_bounds = array<i64: 256, 32>}, {transform_indices = @transform_1, window_bounds = array<i64: 256, 32>}, {pipeline_mode = #tpu.pipeline_mode<synchronous>, transform_indices = @transform_2, window_bounds = array<i64: 32, 32>}, {pipeline_mode = #tpu.pipeline_mode<synchronous>, transform_indices = @transform_3, window_bounds = array<i64: 32, 32>}, {transform_indices = @transform_4, window_bounds = array<i64: 256, 32>}, {transform_indices = @transform_5, window_bounds = array<i64: 256, 32>}]} {
    %c0 = arith.constant 0 : index
    %c0_0 = arith.constant 0 : index
    %0 = vector.load %arg1[%c0, %c0_0] : memref<256x32xf32, #tpu.memory_space<vmem>>, vector<256x32xf32>
    %c0_1 = arith.constant 0 : index
    %c0_2 = arith.constant 0 : index
    %1 = vector.load %arg3[%c0_1, %c0_2] : memref<32x32xf32, #tpu.memory_space<vmem>>, vector<32x32xf32>
    %cst = arith.constant dense<0.000000e+00> : vector<256x32xf32>
    %2 = tpu.matmul %0, %1, %cst {dimension_numbers = #tpu.dot_dimension_numbers<[1], [0], [0], [1], [0, 0, 1, 1], [], []>} : vector<256x32xf32>, vector<32x32xf32>, vector<256x32xf32> -> vector<256x32xf32>
    %c0_3 = arith.constant 0 : index
    %c0_4 = arith.constant 0 : index
    %3 = vector.load %arg5[%c0_3, %c0_4] : memref<256x32xf32, #tpu.memory_space<vmem>>, vector<256x32xf32>
    tpu.vector_store %arg5[%c0_3, %c0_4], %2 {strides = array<i32>} : memref<256x32xf32, #tpu.memory_space<vmem>>, vector<256x32xf32>,
    %c0_5 = arith.constant 0 : index
    %c0_6 = arith.constant 0 : index
    %4 = vector.load %arg2[%c0_5, %c0_6] : memref<256x32xf32, #tpu.memory_space<vmem>>, vector<256x32xf32>
    %c0_7 = arith.constant 0 : index
    %c0_8 = arith.constant 0 : index
    %5 = vector.load %arg4[%c0_7, %c0_8] : memref<32x32xf32, #tpu.memory_space<vmem>>, vector<32x32xf32>
    %cst_9 = arith.constant dense<0.000000e+00> : vector<256x32xf32>
    %6 = tpu.matmul %4, %5, %cst_9 {dimension_numbers = #tpu.dot_dimension_numbers<[1], [0], [0], [1], [0, 0, 1, 1], [], []>} : vector<256x32xf32>, vector<32x32xf32>, vector<256x32xf32> -> vector<256x32xf32>
    %c0_10 = arith.constant 0 : index
    %c0_11 = arith.constant 0 : index
    %7 = vector.load %arg6[%c0_10, %c0_11] : memref<256x32xf32, #tpu.memory_space<vmem>>, vector<256x32xf32>
    tpu.vector_store %arg6[%c0_10, %c0_11], %6 {strides = array<i32>} : memref<256x32xf32, #tpu.memory_space<vmem>>, vector<256x32xf32>,
    return
  }
  func.func @transform_0(%arg0: i32) -> (i32, i32) {
    %c0_i32 = arith.constant 0 : i32
    %c0_i32_0 = arith.constant 0 : i32
    return %arg0, %c0_i32 : i32, i32
  }
  func.func @transform_1(%arg0: i32) -> (i32, i32) {
    %c0_i32 = arith.constant 0 : i32
    %c0_i32_0 = arith.constant 0 : i32
    return %arg0, %c0_i32 : i32, i32
  }
  func.func @transform_2(%arg0: i32) -> (i32, i32) {
    %c0_i32 = arith.constant 0 : i32
    %c0_i32_0 = arith.constant 0 : i32
    %c0_i32_1 = arith.constant 0 : i32
    return %c0_i32, %c0_i32_0 : i32, i32
  }
  func.func @transform_3(%arg0: i32) -> (i32, i32) {
    %c0_i32 = arith.constant 0 : i32
    %c0_i32_0 = arith.constant 0 : i32
    %c0_i32_1 = arith.constant 0 : i32
    return %c0_i32, %c0_i32_0 : i32, i32
  }
  func.func @transform_4(%arg0: i32) -> (i32, i32) {
    %c0_i32 = arith.constant 0 : i32
    %c0_i32_0 = arith.constant 0 : i32
    return %arg0, %c0_i32 : i32, i32
  }
  func.func @transform_5(%arg0: i32) -> (i32, i32) {
    %c0_i32 = arith.constant 0 : i32
    %c0_i32_0 = arith.constant 0 : i32
    return %arg0, %c0_i32 : i32, i32
  }
}

</mosaic_0001>

<llo_original>
// kernel: tpu_custom_call.1
$region0: #{tpu_custom_call.1}
  #allocation0 [shape = 'u32[]', space=smem, size = 0x4, offset = 0x4, fixed_abs, tag = 'smem constant byte address 0x4 - core index']
  #allocation1 [shape = 'u32[144,128]{1,0:T(1,128)}', space=vmem, size = 0x12000, scoped, tag = 'internal scratch']
  %s0 = inlined_call_operand.vmem [shape: f32[256,32], index: 0, kind: input, shape index: {}]
  %s1 = inlined_call_operand.vmem [shape: f32[256,32], index: 1, kind: input, shape index: {}]
  %s2 = inlined_call_operand.vmem [shape: f32[32,32], index: 2, kind: input, shape index: {}]
  %s3 = inlined_call_operand.vmem [shape: f32[32,32], index: 3, kind: input, shape index: {}]
  %s4 = inlined_call_operand.vmem [shape: f32[256,32], index: 4, kind: output, shape index: {0}]
  %s5 = inlined_call_operand.vmem [shape: f32[256,32], index: 5, kind: output, shape index: {1}]
  %6 = xla_tuple %s4, %s5
  %s7 = sld [smem:[#allocation0]]
  $region34: #{tpu_custom_call.1} parent=0
    _
  %s9 = ssub.s32 1, %s7
  %s10 = scalar_select 0, %s9, %s7
  // Predicated region
  $region2: #{tpu_custom_call.1} parent=0 // pred_check
    _
  $region3: #{tpu_custom_call.1} parent=0 // pred_check_branch
    %12 = sbr.rel (0) target = $region5
  $region4: #{tpu_custom_call.1} parent=0 // pred_region
    _
  $region5: #{tpu_custom_call.1} parent=0 // pred_fallthru
    _
  // Predicated region
  $region6: #{tpu_custom_call.1} parent=0 // pred_check
    _
  $region7: #{tpu_custom_call.1} parent=0 // pred_check_branch
    %14 = sbr.rel (0) target = $region9
  $region8: #{tpu_custom_call.1} parent=0 // pred_region
    _
  $region9: #{tpu_custom_call.1} parent=0 // pred_fallthru
    _
  // Predicated region
  $region10: #{tpu_custom_call.1} parent=0 // pred_check
    _
  $region11: #{tpu_custom_call.1} parent=0 // pred_check_branch
    %16 = sbr.rel (0) target = $region13
  $region12: #{tpu_custom_call.1} parent=0 // pred_region
    _
  $region13: #{tpu_custom_call.1} parent=0 // pred_fallthru
    _
  // Predicated region
  $region14: #{tpu_custom_call.1} parent=0 // pred_check
    _
  $region15: #{tpu_custom_call.1} parent=0 // pred_check_branch
    %18 = sbr.rel (0) target = $region17
  $region16: #{tpu_custom_call.1} parent=0 // pred_region
    _
  $region17: #{tpu_custom_call.1} parent=0 // pred_fallthru
    _
  %v19 = vld [vmem:[%s0] sm:$0xff]
  %v20 = vld [vmem:[%s0 + $0x8] sm:$0xff]
  %v21 = vld [vmem:[%s0 + $0x10] sm:$0xff]
  %v22 = vld [vmem:[%s0 + $0x18] sm:$0xff]
  %v23 = vld [vmem:[%s0 + $0x20] sm:$0xff]
  %v24 = vld [vmem:[%s0 + $0x28] sm:$0xff]
  %v25 = vld [vmem:[%s0 + $0x30] sm:$0xff]
  %v26 = vld [vmem:[%s0 + $0x38] sm:$0xff]
  %v27 = vld [vmem:[%s0 + $0x40] sm:$0xff]
  %v28 = vld [vmem:[%s0 + $0x48] sm:$0xff]
  %v29 = vld [vmem:[%s0 + $0x50] sm:$0xff]
  %v30 = vld [vmem:[%s0 + $0x58] sm:$0xff]
  %v31 = vld [vmem:[%s0 + $0x60] sm:$0xff]
  %v32 = vld [vmem:[%s0 + $0x68] sm:$0xff]
  %v33 = vld [vmem:[%s0 + $0x70] sm:$0xff]
  %v34 = vld [vmem:[%s0 + $0x78] sm:$0xff]
  %v35 = vld [vmem:[%s0 + $0x80] sm:$0xff]
  %v36 = vld [vmem:[%s0 + $0x88] sm:$0xff]
  %v37 = vld [vmem:[%s0 + $0x90] sm:$0xff]
  %v38 = vld [vmem:[%s0 + $0x98] sm:$0xff]
  %v39 = vld [vmem:[%s0 + $0xa0] sm:$0xff]
  %v40 = vld [vmem:[%s0 + $0xa8] sm:$0xff]
  %v41 = vld [vmem:[%s0 + $0xb0] sm:$0xff]
  %v42 = vld [vmem:[%s0 + $0xb8] sm:$0xff]
  %v43 = vld [vmem:[%s0 + $0xc0] sm:$0xff]
  %v44 = vld [vmem:[%s0 + $0xc8] sm:$0xff]
  %v45 = vld [vmem:[%s0 + $0xd0] sm:$0xff]
  %v46 = vld [vmem:[%s0 + $0xd8] sm:$0xff]
  %v47 = vld [vmem:[%s0 + $0xe0] sm:$0xff]
  %v48 = vld [vmem:[%s0 + $0xe8] sm:$0xff]
  %v49 = vld [vmem:[%s0 + $0xf0] sm:$0xff]
  %v50 = vld [vmem:[%s0 + $0xf8] sm:$0xff]
  %v51 = vld [vmem:[%s2] sm:$0xff]
  %v52 = vld [vmem:[%s2 + $0x8] sm:$0xff]
  %v53 = vld [vmem:[%s2 + $0x10] sm:$0xff]
  %v54 = vld [vmem:[%s2 + $0x18] sm:$0xff]
  %vm55 = vcmask 261120
  %v57 = vsel %vm55, %v19, 0
  %v60 = vsel %vm55, %v20, 0
  %v63 = vsel %vm55, %v21, 0
  %v66 = vsel %vm55, %v22, 0
  %v69 = vsel %vm55, %v23, 0
  %v72 = vsel %vm55, %v24, 0
  %v75 = vsel %vm55, %v25, 0
  %v78 = vsel %vm55, %v26, 0
  %v81 = vsel %vm55, %v27, 0
  %v84 = vsel %vm55, %v28, 0
  %v87 = vsel %vm55, %v29, 0
  %v90 = vsel %vm55, %v30, 0
  %v93 = vsel %vm55, %v31, 0
  %v96 = vsel %vm55, %v32, 0
  %v99 = vsel %vm55, %v33, 0
  %v102 = vsel %vm55, %v34, 0
  %v105 = vsel %vm55, %v35, 0
  %v108 = vsel %vm55, %v36, 0
  %v111 = vsel %vm55, %v37, 0
  %v114 = vsel %vm55, %v38, 0
  %v117 = vsel %vm55, %v39, 0
  %v120 = vsel %vm55, %v40, 0
  %v123 = vsel %vm55, %v41, 0
  %v126 = vsel %vm55, %v42, 0
  %v129 = vsel %vm55, %v43, 0
  %v132 = vsel %vm55, %v44, 0
  %v135 = vsel %vm55, %v45, 0
  %v138 = vsel %vm55, %v46, 0
  %v141 = vsel %vm55, %v47, 0
  %v144 = vsel %vm55, %v48, 0
  %v147 = vsel %vm55, %v49, 0
  %v150 = vsel %vm55, %v50, 0
  %152 = vmatprep.subr.mxu0 0.0
  %153 = vmatpush1.msra.mxu0 %v51
  %154 = vmatprep.subr.mxu0 0.0
  %155 = vmatpush1.msra.mxu0 %v52
  %156 = vmatprep.subr.mxu0 0.0
  %157 = vmatpush1.msra.mxu0 %v53
  %158 = vmatprep.subr.mxu0 0.0
  %159 = vmatpush1.msra.mxu0 %v54
  %160 = vmatprep.subr.mxu0 0.0
  %161 = vmatpush1.msra.mxu0 0.0
  %162 = vmatprep.subr.mxu0 0.0
  %163 = vmatpush1.msra.mxu0 0.0
  %164 = vmatprep.subr.mxu0 0.0
  %165 = vmatpush1.msra.mxu0 0.0
  %166 = vmatprep.subr.mxu0 0.0
  %167 = vmatpush1.msra.mxu0 0.0
  %168 = vmatprep.subr.mxu0 0.0
  %169 = vmatpush1.msra.mxu0 0.0
  %170 = vmatprep.subr.mxu0 0.0
  %171 = vmatpush1.msra.mxu0 0.0
  %172 = vmatprep.subr.mxu0 0.0
  %173 = vmatpush1.msra.mxu0 0.0
  %174 = vmatprep.subr.mxu0 0.0
  %175 = vmatpush1.msra.mxu0 0.0
  %176 = vmatprep.subr.mxu0 0.0
  %177 = vmatpush1.msra.mxu0 0.0
  %178 = vmatprep.subr.mxu0 0.0
  %179 = vmatpush1.msra.mxu0 0.0
  %180 = vmatprep.subr.mxu0 0.0
  %181 = vmatpush1.msra.mxu0 0.0
  %182 = vmatprep.subr.mxu0 0.0
  %183 = vmatpush1.msra.mxu0 0.0
  %184 = vmatprep.subr.mxu0 0.0
  %185 = vmatpush1.msra.mxu0 0.0
  %186 = vmatprep.subr.mxu0 0.0
  %187 = vmatpush1.msra.mxu0 0.0
  %188 = vmatprep.subr.mxu0 0.0
  %189 = vmatpush1.msra.mxu0 0.0
  %190 = vmatprep.subr.mxu0 0.0
  %191 = vmatpush1.msra.mxu0 0.0
  %192 = vmatprep.subr.mxu0 0.0
  %193 = vmatpush1.msra.mxu0 0.0
  %194 = vmatprep.subr.mxu0 0.0
  %195 = vmatpush1.msra.mxu0 0.0
  %196 = vmatprep.subr.mxu0 0.0
  %197 = vmatpush1.msra.mxu0 0.0
  %198 = vmatprep.subr.mxu0 0.0
  %199 = vmatpush1.msra.mxu0 0.0
  %200 = vmatprep.subr.mxu0 0.0
  %201 = vmatpush1.msra.mxu0 0.0
  %202 = vmatprep.subr.mxu0 0.0
  %203 = vmatpush1.msra.mxu0 0.0
  %204 = vmatprep.subr.mxu0 0.0
  %205 = vmatpush1.msra.mxu0 0.0
  %206 = vmatprep.subr.mxu0 0.0
  %207 = vmatpush1.msra.mxu0 0.0
  %208 = vmatprep.subr.mxu0 0.0
  %209 = vmatpush1.msra.mxu0 0.0
  %210 = vmatprep.subr.mxu0 0.0
  %211 = vmatpush1.msra.mxu0 0.0
  %212 = vmatprep.subr.mxu0 0.0
  %213 = vmatpush1.msra.mxu0 0.0
  %214 = vmatprep.subr.mxu0 0.0
  %215 = vmatpush1.msra.mxu0 0.0
  %216 = vmatprep.mubr.f32.mxu0 0.0
  %217 = vmatmul.mubr.f32.gmra.mrb[0].mxu0 %v57
  %v218 = vpop.f32.mrb[0].mxu0
  %v219 = vadd.f32 0.0, %v218
  %v220 = vpop.f32.mrb[0].mxu0
  %221 = vmatprep.mubr.f32.mxu0 0.0
  %222 = vmatmul.mubr.f32.gmra.mrb[0].mxu0 %v60
  %v223 = vpop.f32.mrb[0].mxu0
  %v224 = vadd.f32 0.0, %v223
  %v225 = vpop.f32.mrb[0].mxu0
  %226 = vmatprep.mubr.f32.mxu0 0.0
  %227 = vmatmul.mubr.f32.gmra.mrb[0].mxu0 %v63
  %v228 = vpop.f32.mrb[0].mxu0
  %v229 = vadd.f32 0.0, %v228
  %v230 = vpop.f32.mrb[0].mxu0
  %231 = vmatprep.mubr.f32.mxu0 0.0
  %232 = vmatmul.mubr.f32.gmra.mrb[0].mxu0 %v66
  %v233 = vpop.f32.mrb[0].mxu0
  %v234 = vadd.f32 0.0, %v233
  %v235 = vpop.f32.mrb[0].mxu0
  %236 = vmatprep.mubr.f32.mxu0 0.0
  %237 = vmatmul.mubr.f32.gmra.mrb[0].mxu0 %v69
  %v238 = vpop.f32.mrb[0].mxu0
  %v239 = vadd.f32 0.0, %v238
  %v240 = vpop.f32.mrb[0].mxu0
  %241 = vmatprep.mubr.f32.mxu0 0.0
  %242 = vmatmul.mubr.f32.gmra.mrb[0].mxu0 %v72
  %v243 = vpop.f32.mrb[0].mxu0
  %v244 = vadd.f32 0.0, %v243
  %v245 = vpop.f32.mrb[0].mxu0
  %246 = vmatprep.mubr.f32.mxu0 0.0
  %247 = vmatmul.mubr.f32.gmra.mrb[0].mxu0 %v75
  %v248 = vpop.f32.mrb[0].mxu0
  %v249 = vadd.f32 0.0, %v248
  %v250 = vpop.f32.mrb[0].mxu0
  %251 = vmatprep.mubr.f32.mxu0 0.0
  %252 = vmatmul.mubr.f32.gmra.mrb[0].mxu0 %v78
  %v253 = vpop.f32.mrb[0].mxu0
  %v254 = vadd.f32 0.0, %v253
  %v255 = vpop.f32.mrb[0].mxu0
  %256 = vmatprep.mubr.f32.mxu0 0.0
  %257 = vmatmul.mubr.f32.gmra.mrb[0].mxu0 %v81
  %v258 = vpop.f32.mrb[0].mxu0
  %v259 = vadd.f32 0.0, %v258
  %v260 = vpop.f32.mrb[0].mxu0
  %261 = vmatprep.mubr.f32.mxu0 0.0
  %262 = vmatmul.mubr.f32.gmra.mrb[0].mxu0 %v84
  %v263 = vpop.f32.mrb[0].mxu0
  %v264 = vadd.f32 0.0, %v263
  %v265 = vpop.f32.mrb[0].mxu0
  %266 = vmatprep.mubr.f32.mxu0 0.0
  %267 = vmatmul.mubr.f32.gmra.mrb[0].mxu0 %v87
  %v268 = vpop.f32.mrb[0].mxu0
  %v269 = vadd.f32 0.0, %v268
  %v270 = vpop.f32.mrb[0].mxu0
  %271 = vmatprep.mubr.f32.mxu0 0.0
  %272 = vmatmul.mubr.f32.gmra.mrb[0].mxu0 %v90
  %v273 = vpop.f32.mrb[0].mxu0
  %v274 = vadd.f32 0.0, %v273
  %v275 = vpop.f32.mrb[0].mxu0
  %276 = vmatprep.mubr.f32.mxu0 0.0
  %277 = vmatmul.mubr.f32.gmra.mrb[0].mxu0 %v93
  %v278 = vpop.f32.mrb[0].mxu0
  %v279 = vadd.f32 0.0, %v278
  %v280 = vpop.f32.mrb[0].mxu0
  %281 = vmatprep.mubr.f32.mxu0 0.0
  %282 = vmatmul.mubr.f32.gmra.mrb[0].mxu0 %v96
  %v283 = vpop.f32.mrb[0].mxu0
  %v284 = vadd.f32 0.0, %v283
  %v285 = vpop.f32.mrb[0].mxu0
  %286 = vmatprep.mubr.f32.mxu0 0.0
  %287 = vmatmul.mubr.f32.gmra.mrb[0].mxu0 %v99
  %v288 = vpop.f32.mrb[0].mxu0
  %v289 = vadd.f32 0.0, %v288
  %v290 = vpop.f32.mrb[0].mxu0
  %291 = vmatprep.mubr.f32.mxu0 0.0
  %292 = vmatmul.mubr.f32.gmra.mrb[0].mxu0 %v102
  %v293 = vpop.f32.mrb[0].mxu0
  %v294 = vadd.f32 0.0, %v293
  %v295 = vpop.f32.mrb[0].mxu0
  %296 = vmatprep.mubr.f32.mxu0 0.0
  %297 = vmatmul.mubr.f32.gmra.mrb[0].mxu0 %v105
  %v298 = vpop.f32.mrb[0].mxu0
  %v299 = vadd.f32 0.0, %v298
  %v300 = vpop.f32.mrb[0].mxu0
  %301 = vmatprep.mubr.f32.mxu0 0.0
  %302 = vmatmul.mubr.f32.gmra.mrb[0].mxu0 %v108
  %v303 = vpop.f32.mrb[0].mxu0
  %v304 = vadd.f32 0.0, %v303
  %v305 = vpop.f32.mrb[0].mxu0
  %306 = vmatprep.mubr.f32.mxu0 0.0
  %307 = vmatmul.mubr.f32.gmra.mrb[0].mxu0 %v111
  %v308 = vpop.f32.mrb[0].mxu0
  %v309 = vadd.f32 0.0, %v308
  %v310 = vpop.f32.mrb[0].mxu0
  %311 = vmatprep.mubr.f32.mxu0 0.0
  %312 = vmatmul.mubr.f32.gmra.mrb[0].mxu0 %v114
  %v313 = vpop.f32.mrb[0].mxu0
  %v314 = vadd.f32 0.0, %v313
  %v315 = vpop.f32.mrb[0].mxu0
  %316 = vmatprep.mubr.f32.mxu0 0.0
  %317 = vmatmul.mubr.f32.gmra.mrb[0].mxu0 %v117
  %v318 = vpop.f32.mrb[0].mxu0
  %v319 = vadd.f32 0.0, %v318
  %v320 = vpop.f32.mrb[0].mxu0
  %321 = vmatprep.mubr.f32.mxu0 0.0
  %322 = vmatmul.mubr.f32.gmra.mrb[0].mxu0 %v120
  %v323 = vpop.f32.mrb[0].mxu0
  %v324 = vadd.f32 0.0, %v323
  %v325 = vpop.f32.mrb[0].mxu0
  %326 = vmatprep.mubr.f32.mxu0 0.0
  %327 = vmatmul.mubr.f32.gmra.mrb[0].mxu0 %v123
  %v328 = vpop.f32.mrb[0].mxu0
  %v329 = vadd.f32 0.0, %v328
  %v330 = vpop.f32.mrb[0].mxu0
  %331 = vmatprep.mubr.f32.mxu0 0.0
  %332 = vmatmul.mubr.f32.gmra.mrb[0].mxu0 %v126
  %v333 = vpop.f32.mrb[0].mxu0
  %v334 = vadd.f32 0.0, %v333
  %v335 = vpop.f32.mrb[0].mxu0
  %336 = vmatprep.mubr.f32.mxu0 0.0
  %337 = vmatmul.mubr.f32.gmra.mrb[0].mxu0 %v129
  %v338 = vpop.f32.mrb[0].mxu0
  %v339 = vadd.f32 0.0, %v338
  %v340 = vpop.f32.mrb[0].mxu0
  %341 = vmatprep.mubr.f32.mxu0 0.0
  %342 = vmatmul.mubr.f32.gmra.mrb[0].mxu0 %v132
  %v343 = vpop.f32.mrb[0].mxu0
  %v344 = vadd.f32 0.0, %v343
  %v345 = vpop.f32.mrb[0].mxu0
  %346 = vmatprep.mubr.f32.mxu0 0.0
  %347 = vmatmul.mubr.f32.gmra.mrb[0].mxu0 %v135
  %v348 = vpop.f32.mrb[0].mxu0
  %v349 = vadd.f32 0.0, %v348
  %v350 = vpop.f32.mrb[0].mxu0
  %351 = vmatprep.mubr.f32.mxu0 0.0
  %352 = vmatmul.mubr.f32.gmra.mrb[0].mxu0 %v138
  %v353 = vpop.f32.mrb[0].mxu0
  %v354 = vadd.f32 0.0, %v353
  %v355 = vpop.f32.mrb[0].mxu0
  %356 = vmatprep.mubr.f32.mxu0 0.0
  %357 = vmatmul.mubr.f32.gmra.mrb[0].mxu0 %v141
  %v358 = vpop.f32.mrb[0].mxu0
  %v359 = vadd.f32 0.0, %v358
  %v360 = vpop.f32.mrb[0].mxu0
  %361 = vmatprep.mubr.f32.mxu0 0.0
  %362 = vmatmul.mubr.f32.gmra.mrb[0].mxu0 %v144
  %v363 = vpop.f32.mrb[0].mxu0
  %v364 = vadd.f32 0.0, %v363
  %v365 = vpop.f32.mrb[0].mxu0
  %366 = vmatprep.mubr.f32.mxu0 0.0
  %367 = vmatmul.mubr.f32.gmra.mrb[0].mxu0 %v147
  %v368 = vpop.f32.mrb[0].mxu0
  %v369 = vadd.f32 0.0, %v368
  %v370 = vpop.f32.mrb[0].mxu0
  %371 = vmatprep.mubr.f32.mxu0 0.0
  %372 = vmatmul.mubr.f32.gmra.mrb[0].mxu0 %v150
  %v373 = vpop.f32.mrb[0].mxu0
  %v374 = vadd.f32 0.0, %v373
  %v375 = vpop.f32.mrb[0].mxu0
  %376 = vdwg.mxu0
  %377 = vst.msk [vmem:[%s4] sm:$0xff] %vm55, %v219
  %378 = vst.msk [vmem:[%s4 + $0x8] sm:$0xff] %vm55, %v224
  %379 = vst.msk [vmem:[%s4 + $0x10] sm:$0xff] %vm55, %v229
  %380 = vst.msk [vmem:[%s4 + $0x18] sm:$0xff] %vm55, %v234
  %381 = vst.msk [vmem:[%s4 + $0x20] sm:$0xff] %vm55, %v239
  %382 = vst.msk [vmem:[%s4 + $0x28] sm:$0xff] %vm55, %v244
  %383 = vst.msk [vmem:[%s4 + $0x30] sm:$0xff] %vm55, %v249
  %384 = vst.msk [vmem:[%s4 + $0x38] sm:$0xff] %vm55, %v254
  %385 = vst.msk [vmem:[%s4 + $0x40] sm:$0xff] %vm55, %v259
  %386 = vst.msk [vmem:[%s4 + $0x48] sm:$0xff] %vm55, %v264
  %387 = vst.msk [vmem:[%s4 + $0x50] sm:$0xff] %vm55, %v269
  %388 = vst.msk [vmem:[%s4 + $0x58] sm:$0xff] %vm55, %v274
  %389 = vst.msk [vmem:[%s4 + $0x60] sm:$0xff] %vm55, %v279
  %390 = vst.msk [vmem:[%s4 + $0x68] sm:$0xff] %vm55, %v284
  %391 = vst.msk [vmem:[%s4 + $0x70] sm:$0xff] %vm55, %v289
  %392 = vst.msk [vmem:[%s4 + $0x78] sm:$0xff] %vm55, %v294
  %393 = vst.msk [vmem:[%s4 + $0x80] sm:$0xff] %vm55, %v299
  %394 = vst.msk [vmem:[%s4 + $0x88] sm:$0xff] %vm55, %v304
  %395 = vst.msk [vmem:[%s4 + $0x90] sm:$0xff] %vm55, %v309
  %396 = vst.msk [vmem:[%s4 + $0x98] sm:$0xff] %vm55, %v314
  %397 = vst.msk [vmem:[%s4 + $0xa0] sm:$0xff] %vm55, %v319
  %398 = vst.msk [vmem:[%s4 + $0xa8] sm:$0xff] %vm55, %v324
  %399 = vst.msk [vmem:[%s4 + $0xb0] sm:$0xff] %vm55, %v329
  %400 = vst.msk [vmem:[%s4 + $0xb8] sm:$0xff] %vm55, %v334
  %401 = vst.msk [vmem:[%s4 + $0xc0] sm:$0xff] %vm55, %v339
  %402 = vst.msk [vmem:[%s4 + $0xc8] sm:$0xff] %vm55, %v344
  %403 = vst.msk [vmem:[%s4 + $0xd0] sm:$0xff] %vm55, %v349
  %404 = vst.msk [vmem:[%s4 + $0xd8] sm:$0xff] %vm55, %v354
  %405 = vst.msk [vmem:[%s4 + $0xe0] sm:$0xff] %vm55, %v359
  %406 = vst.msk [vmem:[%s4 + $0xe8] sm:$0xff] %vm55, %v364
  %407 = vst.msk [vmem:[%s4 + $0xf0] sm:$0xff] %vm55, %v369
  %408 = vst.msk [vmem:[%s4 + $0xf8] sm:$0xff] %vm55, %v374
  %v409 = vld [vmem:[%s1] sm:$0xff]
  %v410 = vld [vmem:[%s1 + $0x8] sm:$0xff]
  %v411 = vld [vmem:[%s1 + $0x10] sm:$0xff]
  %v412 = vld [vmem:[%s1 + $0x18] sm:$0xff]
  %v413 = vld [vmem:[%s1 + $0x20] sm:$0xff]
  %v414 = vld [vmem:[%s1 + $0x28] sm:$0xff]
  %v415 = vld [vmem:[%s1 + $0x30] sm:$0xff]
  %v416 = vld [vmem:[%s1 + $0x38] sm:$0xff]
  %v417 = vld [vmem:[%s1 + $0x40] sm:$0xff]
  %v418 = vld [vmem:[%s1 + $0x48] sm:$0xff]
  %v419 = vld [vmem:[%s1 + $0x50] sm:$0xff]
  %v420 = vld [vmem:[%s1 + $0x58] sm:$0xff]
  %v421 = vld [vmem:[%s1 + $0x60] sm:$0xff]
  %v422 = vld [vmem:[%s1 + $0x68] sm:$0xff]
  %v423 = vld [vmem:[%s1 + $0x70] sm:$0xff]
  %v424 = vld [vmem:[%s1 + $0x78] sm:$0xff]
  %v425 = vld [vmem:[%s1 + $0x80] sm:$0xff]
  %v426 = vld [vmem:[%s1 + $0x88] sm:$0xff]
  %v427 = vld [vmem:[%s1 + $0x90] sm:$0xff]
  %v428 = vld [vmem:[%s1 + $0x98] sm:$0xff]
  %v429 = vld [vmem:[%s1 + $0xa0] sm:$0xff]
  %v430 = vld [vmem:[%s1 + $0xa8] sm:$0xff]
  %v431 = vld [vmem:[%s1 + $0xb0] sm:$0xff]
  %v432 = vld [vmem:[%s1 + $0xb8] sm:$0xff]
  %v433 = vld [vmem:[%s1 + $0xc0] sm:$0xff]
  %v434 = vld [vmem:[%s1 + $0xc8] sm:$0xff]
  %v435 = vld [vmem:[%s1 + $0xd0] sm:$0xff]
  %v436 = vld [vmem:[%s1 + $0xd8] sm:$0xff]
  %v437 = vld [vmem:[%s1 + $0xe0] sm:$0xff]
  %v438 = vld [vmem:[%s1 + $0xe8] sm:$0xff]
  %v439 = vld [vmem:[%s1 + $0xf0] sm:$0xff]
  %v440 = vld [vmem:[%s1 + $0xf8] sm:$0xff]
  %v441 = vld [vmem:[%s3] sm:$0xff]
  %v442 = vld [vmem:[%s3 + $0x8] sm:$0xff]
  %v443 = vld [vmem:[%s3 + $0x10] sm:$0xff]
  %v444 = vld [vmem:[%s3 + $0x18] sm:$0xff]
  %v446 = vsel %vm55, %v409, 0
  %v449 = vsel %vm55, %v410, 0
  %v452 = vsel %vm55, %v411, 0
  %v455 = vsel %vm55, %v412, 0
  %v458 = vsel %vm55, %v413, 0
  %v461 = vsel %vm55, %v414, 0
  %v464 = vsel %vm55, %v415, 0
  %v467 = vsel %vm55, %v416, 0
  %v470 = vsel %vm55, %v417, 0
  %v473 = vsel %vm55, %v418, 0
  %v476 = vsel %vm55, %v419, 0
  %v479 = vsel %vm55, %v420, 0
  %v482 = vsel %vm55, %v421, 0
  %v485 = vsel %vm55, %v422, 0
  %v488 = vsel %vm55, %v423, 0
  %v491 = vsel %vm55, %v424, 0
  %v494 = vsel %vm55, %v425, 0
  %v497 = vsel %vm55, %v426, 0
  %v500 = vsel %vm55, %v427, 0
  %v503 = vsel %vm55, %v428, 0
  %v506 = vsel %vm55, %v429, 0
  %v509 = vsel %vm55, %v430, 0
  %v512 = vsel %vm55, %v431, 0
  %v515 = vsel %vm55, %v432, 0
  %v518 = vsel %vm55, %v433, 0
  %v521 = vsel %vm55, %v434, 0
  %v524 = vsel %vm55, %v435, 0
  %v527 = vsel %vm55, %v436, 0
  %v530 = vsel %vm55, %v437, 0
  %v533 = vsel %vm55, %v438, 0
  %v536 = vsel %vm55, %v439, 0
  %v539 = vsel %vm55, %v440, 0
  %541 = vmatprep.subr.mxu0 0.0
  %542 = vmatpush1.msra.mxu0 %v441
  %543 = vmatprep.subr.mxu0 0.0
  %544 = vmatpush1.msra.mxu0 %v442
  %545 = vmatprep.subr.mxu0 0.0
  %546 = vmatpush1.msra.mxu0 %v443
  %547 = vmatprep.subr.mxu0 0.0
  %548 = vmatpush1.msra.mxu0 %v444
  %549 = vmatprep.subr.mxu0 0.0
  %550 = vmatpush1.msra.mxu0 0.0
  %551 = vmatprep.subr.mxu0 0.0
  %552 = vmatpush1.msra.mxu0 0.0
  %553 = vmatprep.subr.mxu0 0.0
  %554 = vmatpush1.msra.mxu0 0.0
  %555 = vmatprep.subr.mxu0 0.0
  %556 = vmatpush1.msra.mxu0 0.0
  %557 = vmatprep.subr.mxu0 0.0
  %558 = vmatpush1.msra.mxu0 0.0
  %559 = vmatprep.subr.mxu0 0.0
  %560 = vmatpush1.msra.mxu0 0.0
  %561 = vmatprep.subr.mxu0 0.0
  %562 = vmatpush1.msra.mxu0 0.0
  %563 = vmatprep.subr.mxu0 0.0
  %564 = vmatpush1.msra.mxu0 0.0
  %565 = vmatprep.subr.mxu0 0.0
  %566 = vmatpush1.msra.mxu0 0.0
  %567 = vmatprep.subr.mxu0 0.0
  %568 = vmatpush1.msra.mxu0 0.0
  %569 = vmatprep.subr.mxu0 0.0
  %570 = vmatpush1.msra.mxu0 0.0
  %571 = vmatprep.subr.mxu0 0.0
  %572 = vmatpush1.msra.mxu0 0.0
  %573 = vmatprep.subr.mxu0 0.0
  %574 = vmatpush1.msra.mxu0 0.0
  %575 = vmatprep.subr.mxu0 0.0
  %576 = vmatpush1.msra.mxu0 0.0
  %577 = vmatprep.subr.mxu0 0.0
  %578 = vmatpush1.msra.mxu0 0.0
  %579 = vmatprep.subr.mxu0 0.0
  %580 = vmatpush1.msra.mxu0 0.0
  %581 = vmatprep.subr.mxu0 0.0
  %582 = vmatpush1.msra.mxu0 0.0
  %583 = vmatprep.subr.mxu0 0.0
  %584 = vmatpush1.msra.mxu0 0.0
  %585 = vmatprep.subr.mxu0 0.0
  %586 = vmatpush1.msra.mxu0 0.0
  %587 = vmatprep.subr.mxu0 0.0
  %588 = vmatpush1.msra.mxu0 0.0
  %589 = vmatprep.subr.mxu0 0.0
  %590 = vmatpush1.msra.mxu0 0.0
  %591 = vmatprep.subr.mxu0 0.0
  %592 = vmatpush1.msra.mxu0 0.0
  %593 = vmatprep.subr.mxu0 0.0
  %594 = vmatpush1.msra.mxu0 0.0
  %595 = vmatprep.subr.mxu0 0.0
  %596 = vmatpush1.msra.mxu0 0.0
  %597 = vmatprep.subr.mxu0 0.0
  %598 = vmatpush1.msra.mxu0 0.0
  %599 = vmatprep.subr.mxu0 0.0
  %600 = vmatpush1.msra.mxu0 0.0
  %601 = vmatprep.subr.mxu0 0.0
  %602 = vmatpush1.msra.mxu0 0.0
  %603 = vmatprep.subr.mxu0 0.0
  %604 = vmatpush1.msra.mxu0 0.0
  %605 = vmatprep.mubr.f32.mxu0 0.0
  %606 = vmatmul.mubr.f32.gmra.mrb[0].mxu0 %v446
  %v607 = vpop.f32.mrb[0].mxu0
  %v608 = vadd.f32 0.0, %v607
  %v609 = vpop.f32.mrb[0].mxu0
  %610 = vmatprep.mubr.f32.mxu0 0.0
  %611 = vmatmul.mubr.f32.gmra.mrb[0].mxu0 %v449
  %v612 = vpop.f32.mrb[0].mxu0
  %v613 = vadd.f32 0.0, %v612
  %v614 = vpop.f32.mrb[0].mxu0
  %615 = vmatprep.mubr.f32.mxu0 0.0
  %616 = vmatmul.mubr.f32.gmra.mrb[0].mxu0 %v452
  %v617 = vpop.f32.mrb[0].mxu0
  %v618 = vadd.f32 0.0, %v617
  %v619 = vpop.f32.mrb[0].mxu0
  %620 = vmatprep.mubr.f32.mxu0 0.0
  %621 = vmatmul.mubr.f32.gmra.mrb[0].mxu0 %v455
  %v622 = vpop.f32.mrb[0].mxu0
  %v623 = vadd.f32 0.0, %v622
  %v624 = vpop.f32.mrb[0].mxu0
  %625 = vmatprep.mubr.f32.mxu0 0.0
  %626 = vmatmul.mubr.f32.gmra.mrb[0].mxu0 %v458
  %v627 = vpop.f32.mrb[0].mxu0
  %v628 = vadd.f32 0.0, %v627
  %v629 = vpop.f32.mrb[0].mxu0
  %630 = vmatprep.mubr.f32.mxu0 0.0
  %631 = vmatmul.mubr.f32.gmra.mrb[0].mxu0 %v461
  %v632 = vpop.f32.mrb[0].mxu0
  %v633 = vadd.f32 0.0, %v632
  %v634 = vpop.f32.mrb[0].mxu0
  %635 = vmatprep.mubr.f32.mxu0 0.0
  %636 = vmatmul.mubr.f32.gmra.mrb[0].mxu0 %v464
  %v637 = vpop.f32.mrb[0].mxu0
  %v638 = vadd.f32 0.0, %v637
  %v639 = vpop.f32.mrb[0].mxu0
  %640 = vmatprep.mubr.f32.mxu0 0.0
  %641 = vmatmul.mubr.f32.gmra.mrb[0].mxu0 %v467
  %v642 = vpop.f32.mrb[0].mxu0
  %v643 = vadd.f32 0.0, %v642
  %v644 = vpop.f32.mrb[0].mxu0
  %645 = vmatprep.mubr.f32.mxu0 0.0
  %646 = vmatmul.mubr.f32.gmra.mrb[0].mxu0 %v470
  %v647 = vpop.f32.mrb[0].mxu0
  %v648 = vadd.f32 0.0, %v647
  %v649 = vpop.f32.mrb[0].mxu0
  %650 = vmatprep.mubr.f32.mxu0 0.0
  %651 = vmatmul.mubr.f32.gmra.mrb[0].mxu0 %v473
  %v652 = vpop.f32.mrb[0].mxu0
  %v653 = vadd.f32 0.0, %v652
  %v654 = vpop.f32.mrb[0].mxu0
  %655 = vmatprep.mubr.f32.mxu0 0.0
  %656 = vmatmul.mubr.f32.gmra.mrb[0].mxu0 %v476
  %v657 = vpop.f32.mrb[0].mxu0
  %v658 = vadd.f32 0.0, %v657
  %v659 = vpop.f32.mrb[0].mxu0
  %660 = vmatprep.mubr.f32.mxu0 0.0
  %661 = vmatmul.mubr.f32.gmra.mrb[0].mxu0 %v479
  %v662 = vpop.f32.mrb[0].mxu0
  %v663 = vadd.f32 0.0, %v662
  %v664 = vpop.f32.mrb[0].mxu0
  %665 = vmatprep.mubr.f32.mxu0 0.0
  %666 = vmatmul.mubr.f32.gmra.mrb[0].mxu0 %v482
  %v667 = vpop.f32.mrb[0].mxu0
  %v668 = vadd.f32 0.0, %v667
  %v669 = vpop.f32.mrb[0].mxu0
  %670 = vmatprep.mubr.f32.mxu0 0.0
  %671 = vmatmul.mubr.f32.gmra.mrb[0].mxu0 %v485
  %v672 = vpop.f32.mrb[0].mxu0
  %v673 = vadd.f32 0.0, %v672
  %v674 = vpop.f32.mrb[0].mxu0
  %675 = vmatprep.mubr.f32.mxu0 0.0
  %676 = vmatmul.mubr.f32.gmra.mrb[0].mxu0 %v488
  %v677 = vpop.f32.mrb[0].mxu0
  %v678 = vadd.f32 0.0, %v677
  %v679 = vpop.f32.mrb[0].mxu0
  %680 = vmatprep.mubr.f32.mxu0 0.0
  %681 = vmatmul.mubr.f32.gmra.mrb[0].mxu0 %v491
  %v682 = vpop.f32.mrb[0].mxu0
  %v683 = vadd.f32 0.0, %v682
  %v684 = vpop.f32.mrb[0].mxu0
  %685 = vmatprep.mubr.f32.mxu0 0.0
  %686 = vmatmul.mubr.f32.gmra.mrb[0].mxu0 %v494
  %v687 = vpop.f32.mrb[0].mxu0
  %v688 = vadd.f32 0.0, %v687
  %v689 = vpop.f32.mrb[0].mxu0
  %690 = vmatprep.mubr.f32.mxu0 0.0
  %691 = vmatmul.mubr.f32.gmra.mrb[0].mxu0 %v497
  %v692 = vpop.f32.mrb[0].mxu0
  %v693 = vadd.f32 0.0, %v692
  %v694 = vpop.f32.mrb[0].mxu0
  %695 = vmatprep.mubr.f32.mxu0 0.0
  %696 = vmatmul.mubr.f32.gmra.mrb[0].mxu0 %v500
  %v697 = vpop.f32.mrb[0].mxu0
  %v698 = vadd.f32 0.0, %v697
  %v699 = vpop.f32.mrb[0].mxu0
  %700 = vmatprep.mubr.f32.mxu0 0.0
  %701 = vmatmul.mubr.f32.gmra.mrb[0].mxu0 %v503
  %v702 = vpop.f32.mrb[0].mxu0
  %v703 = vadd.f32 0.0, %v702
  %v704 = vpop.f32.mrb[0].mxu0
  %705 = vmatprep.mubr.f32.mxu0 0.0
  %706 = vmatmul.mubr.f32.gmra.mrb[0].mxu0 %v506
  %v707 = vpop.f32.mrb[0].mxu0
  %v708 = vadd.f32 0.0, %v707
  %v709 = vpop.f32.mrb[0].mxu0
  %710 = vmatprep.mubr.f32.mxu0 0.0
  %711 = vmatmul.mubr.f32.gmra.mrb[0].mxu0 %v509
  %v712 = vpop.f32.mrb[0].mxu0
  %v713 = vadd.f32 0.0, %v712
  %v714 = vpop.f32.mrb[0].mxu0
  %715 = vmatprep.mubr.f32.mxu0 0.0
  %716 = vmatmul.mubr.f32.gmra.mrb[0].mxu0 %v512
  %v717 = vpop.f32.mrb[0].mxu0
  %v718 = vadd.f32 0.0, %v717
  %v719 = vpop.f32.mrb[0].mxu0
  %720 = vmatprep.mubr.f32.mxu0 0.0
  %721 = vmatmul.mubr.f32.gmra.mrb[0].mxu0 %v515
  %v722 = vpop.f32.mrb[0].mxu0
  %v723 = vadd.f32 0.0, %v722
  %v724 = vpop.f32.mrb[0].mxu0
  %725 = vmatprep.mubr.f32.mxu0 0.0
  %726 = vmatmul.mubr.f32.gmra.mrb[0].mxu0 %v518
  %v727 = vpop.f32.mrb[0].mxu0
  %v728 = vadd.f32 0.0, %v727
  %v729 = vpop.f32.mrb[0].mxu0
  %730 = vmatprep.mubr.f32.mxu0 0.0
  %731 = vmatmul.mubr.f32.gmra.mrb[0].mxu0 %v521
  %v732 = vpop.f32.mrb[0].mxu0
  %v733 = vadd.f32 0.0, %v732
  %v734 = vpop.f32.mrb[0].mxu0
  %735 = vmatprep.mubr.f32.mxu0 0.0
  %736 = vmatmul.mubr.f32.gmra.mrb[0].mxu0 %v524
  %v737 = vpop.f32.mrb[0].mxu0
  %v738 = vadd.f32 0.0, %v737
  %v739 = vpop.f32.mrb[0].mxu0
  %740 = vmatprep.mubr.f32.mxu0 0.0
  %741 = vmatmul.mubr.f32.gmra.mrb[0].mxu0 %v527
  %v742 = vpop.f32.mrb[0].mxu0
  %v743 = vadd.f32 0.0, %v742
  %v744 = vpop.f32.mrb[0].mxu0
  %745 = vmatprep.mubr.f32.mxu0 0.0
  %746 = vmatmul.mubr.f32.gmra.mrb[0].mxu0 %v530
  %v747 = vpop.f32.mrb[0].mxu0
  %v748 = vadd.f32 0.0, %v747
  %v749 = vpop.f32.mrb[0].mxu0
  %750 = vmatprep.mubr.f32.mxu0 0.0
  %751 = vmatmul.mubr.f32.gmra.mrb[0].mxu0 %v533
  %v752 = vpop.f32.mrb[0].mxu0
  %v753 = vadd.f32 0.0, %v752
  %v754 = vpop.f32.mrb[0].mxu0
  %755 = vmatprep.mubr.f32.mxu0 0.0
  %756 = vmatmul.mubr.f32.gmra.mrb[0].mxu0 %v536
  %v757 = vpop.f32.mrb[0].mxu0
  %v758 = vadd.f32 0.0, %v757
  %v759 = vpop.f32.mrb[0].mxu0
  %760 = vmatprep.mubr.f32.mxu0 0.0
  %761 = vmatmul.mubr.f32.gmra.mrb[0].mxu0 %v539
  %v762 = vpop.f32.mrb[0].mxu0
  %v763 = vadd.f32 0.0, %v762
  %v764 = vpop.f32.mrb[0].mxu0
  %765 = vdwg.mxu0
  %766 = vst.msk [vmem:[%s5] sm:$0xff] %vm55, %v608
  %767 = vst.msk [vmem:[%s5 + $0x8] sm:$0xff] %vm55, %v613
  %768 = vst.msk [vmem:[%s5 + $0x10] sm:$0xff] %vm55, %v618
  %769 = vst.msk [vmem:[%s5 + $0x18] sm:$0xff] %vm55, %v623
  %770 = vst.msk [vmem:[%s5 + $0x20] sm:$0xff] %vm55, %v628
  %771 = vst.msk [vmem:[%s5 + $0x28] sm:$0xff] %vm55, %v633
  %772 = vst.msk [vmem:[%s5 + $0x30] sm:$0xff] %vm55, %v638
  %773 = vst.msk [vmem:[%s5 + $0x38] sm:$0xff] %vm55, %v643
  %774 = vst.msk [vmem:[%s5 + $0x40] sm:$0xff] %vm55, %v648
  %775 = vst.msk [vmem:[%s5 + $0x48] sm:$0xff] %vm55, %v653
  %776 = vst.msk [vmem:[%s5 + $0x50] sm:$0xff] %vm55, %v658
  %777 = vst.msk [vmem:[%s5 + $0x58] sm:$0xff] %vm55, %v663
  %778 = vst.msk [vmem:[%s5 + $0x60] sm:$0xff] %vm55, %v668
  %779 = vst.msk [vmem:[%s5 + $0x68] sm:$0xff] %vm55, %v673
  %780 = vst.msk [vmem:[%s5 + $0x70] sm:$0xff] %vm55, %v678
  %781 = vst.msk [vmem:[%s5 + $0x78] sm:$0xff] %vm55, %v683
  %782 = vst.msk [vmem:[%s5 + $0x80] sm:$0xff] %vm55, %v688
  %783 = vst.msk [vmem:[%s5 + $0x88] sm:$0xff] %vm55, %v693
  %784 = vst.msk [vmem:[%s5 + $0x90] sm:$0xff] %vm55, %v698
  %785 = vst.msk [vmem:[%s5 + $0x98] sm:$0xff] %vm55, %v703
  %786 = vst.msk [vmem:[%s5 + $0xa0] sm:$0xff] %vm55, %v708
  %787 = vst.msk [vmem:[%s5 + $0xa8] sm:$0xff] %vm55, %v713
  %788 = vst.msk [vmem:[%s5 + $0xb0] sm:$0xff] %vm55, %v718
  %789 = vst.msk [vmem:[%s5 + $0xb8] sm:$0xff] %vm55, %v723
  %790 = vst.msk [vmem:[%s5 + $0xc0] sm:$0xff] %vm55, %v728
  %791 = vst.msk [vmem:[%s5 + $0xc8] sm:$0xff] %vm55, %v733
  %792 = vst.msk [vmem:[%s5 + $0xd0] sm:$0xff] %vm55, %v738
  %793 = vst.msk [vmem:[%s5 + $0xd8] sm:$0xff] %vm55, %v743
  %794 = vst.msk [vmem:[%s5 + $0xe0] sm:$0xff] %vm55, %v748
  %795 = vst.msk [vmem:[%s5 + $0xe8] sm:$0xff] %vm55, %v753
  %796 = vst.msk [vmem:[%s5 + $0xf0] sm:$0xff] %vm55, %v758
  %797 = vst.msk [vmem:[%s5 + $0xf8] sm:$0xff] %vm55, %v763
  // Predicated region
  $region18: #{tpu_custom_call.1} parent=0 // pred_check
    _
  $region19: #{tpu_custom_call.1} parent=0 // pred_check_branch
    %799 = sbr.rel (0) target = $region21
  $region20: #{tpu_custom_call.1} parent=0 // pred_region
    _
  $region21: #{tpu_custom_call.1} parent=0 // pred_fallthru
    _
  // Predicated region
  $region22: #{tpu_custom_call.1} parent=0 // pred_check
    _
  $region23: #{tpu_custom_call.1} parent=0 // pred_check_branch
    %801 = sbr.rel (0) target = $region25
  $region24: #{tpu_custom_call.1} parent=0 // pred_region
    _
  $region25: #{tpu_custom_call.1} parent=0 // pred_fallthru
    _
  // Predicated region
  $region26: #{tpu_custom_call.1} parent=0 // pred_check
    _
  $region27: #{tpu_custom_call.1} parent=0 // pred_check_branch
    %803 = sbr.rel (0) target = $region29
  $region28: #{tpu_custom_call.1} parent=0 // pred_region
    _
  $region29: #{tpu_custom_call.1} parent=0 // pred_fallthru
    _
  // Predicated region
  $region30: #{tpu_custom_call.1} parent=0 // pred_check
    _
  $region31: #{tpu_custom_call.1} parent=0 // pred_check_branch
    %805 = sbr.rel (0) target = $region33
  $region32: #{tpu_custom_call.1} parent=0 // pred_region
    _
  $region33: #{tpu_custom_call.1} parent=0 // pred_fallthru
    _

</llo_original>
